<compile_context>
chip_gen: v7x
topology: tpu7x:2x2x1
jax: 0.10.0
libtpu: 0.0.40
codegen_flags: <defaults>
</compile_context>

<pallas_src>
import numpy as np
import jax
import jax.numpy as jnp
from jax.experimental import pallas as pl
from jax.experimental.pallas import tpu as pltpu


# ----------------------------- Pallas kernel ------------------------------- #

def _copy_kernel(x_ref, o_ref):
    # Identity: move the current VMEM tile from input to output.
    o_ref[...] = x_ref[...]


# ------------------------------ wrapper ------------------------------------ #

def _plan_lane_dense_2d(total_elems):
    """Pick a lane-dense [M, N] view of a flat buffer (N a multiple of 128 if possible)."""
    for lane in (2048, 1024, 512, 256, 128):
        if total_elems % lane == 0:
            return total_elems // lane, lane
    # Odd sizes: single row, full-extent block (legal: block dims == array dims).
    return 1, total_elems


def _sublane_multiple(dtype):
    """Sublane packing requirement for the second-to-last dim (f32:8, bf16:16, int8:32)."""
    itemsize = jnp.dtype(dtype).itemsize
    return max(8, (8 * 4) // max(1, itemsize))


def id_forward(xs, *, target_tile_bytes=2 << 20):
    """Forward pass of ID: return x[-1], moved through a tiled Pallas copy kernel."""
    assert isinstance(xs, (list, tuple)), "ID.forward expects a list input"
    x = jnp.asarray(xs[-1])

    flat = x.reshape(-1)
    total = flat.shape[0]
    M, N = _plan_lane_dense_2d(total)
    x2 = flat.reshape(M, N)

    itemsize = jnp.dtype(x2.dtype).itemsize
    sub = _sublane_multiple(x2.dtype)
    row_bytes = N * itemsize

    # Row tile: full extent if small, else the largest sublane-multiple tile that
    # keeps one block near `target_tile_bytes` (double-buffered in + out still fits
    # comfortably in the scoped-VMEM default on every chip generation).
    max_rows = max(sub, (target_tile_bytes // max(1, row_bytes)) // sub * sub)
    if M <= max_rows or N % 128 != 0:
        tm = M
    else:
        tm = int(max_rows)
    grid = (pl.cdiv(M, tm),)

    y2 = pl.pallas_call(
        _copy_kernel,
        out_shape=jax.ShapeDtypeStruct((M, N), x2.dtype),
        grid=grid,
        in_specs=[pl.BlockSpec((tm, N), lambda i: (i, 0))],
        out_specs=pl.BlockSpec((tm, N), lambda i: (i, 0)),
        compiler_params=pltpu.CompilerParams(
            dimension_semantics=("parallel",)),  # megacore sharding on v7x, no-op elsewhere
    )(x2)
    return y2.reshape(x.shape)


class ID:
    """Mirror of the PyTorch module (latent_dim is stored but unused, as in the original)."""

    def __init__(self, latent_dim):
        self.latent_dim = latent_dim

    def __call__(self, x):
        assert isinstance(x, list)
        return id_forward(x)


# ------------------------------- test driver ------------------------------- #

if __name__ == "__main__":
    key = jax.random.PRNGKey(0)
    k1, k2, k3 = jax.random.split(key, 3)

    # A list of tensors, exactly what ID.forward consumes; it must return the last one.
    xs = [
        jax.random.normal(k1, (2, 4, 16, 16), jnp.float32),   # earlier pipeline outputs
        jax.random.normal(k2, (2, 4, 16, 16), jnp.float32),
        jax.random.normal(k3, (2, 8192), jnp.float32),        # last element (latent features)
    ]
    model = ID(latent_dim=8192)
    out = jax.block_until_ready(model(xs))
    assert out.shape == xs[-1].shape and out.dtype == xs[-1].dtype
    np.testing.assert_array_equal(np.asarray(out), np.asarray(xs[-1]))

    # Multi-block / pipelined path: force a tiny tile budget so the grid has >1 step.
    xs_big = [jax.random.normal(k2, (4, 8, 16, 128), jnp.float32)]
    out_big = jax.block_until_ready(id_forward(xs_big, target_tile_bytes=64 * 1024))
    np.testing.assert_array_equal(np.asarray(out_big), np.asarray(xs_big[-1]))

    # bf16 path: exercises the dtype-dependent sublane-multiple tiling.
    xs_bf16 = [jax.random.normal(k3, (2, 16, 256), jnp.float32).astype(jnp.bfloat16)]
    out_bf16 = jax.block_until_ready(id_forward(xs_bf16, target_tile_bytes=32 * 1024))
    np.testing.assert_array_equal(np.asarray(out_bf16), np.asarray(xs_bf16[-1]))

    # Odd size (not a multiple of 128): exercises the single full-extent-block fallback.
    xs_odd = [jax.random.normal(k1, (3, 5, 7), jnp.float32)]
    out_odd = jax.block_until_ready(id_forward(xs_odd))
    np.testing.assert_array_equal(np.asarray(out_odd), np.asarray(xs_odd[-1]))

    print("KERNEL_OK")
</pallas_src>

<mosaic_0001>
module attributes {stable_mosaic.version = 11 : i64} {
  func.func @_copy_kernel(%arg0: i32, %arg1: memref<8x2048xf32, #tpu.memory_space<vmem>>, %arg2: memref<8x2048xf32, #tpu.memory_space<vmem>>) attributes {dimension_semantics = [#tpu.dimension_semantics<parallel>], iteration_bounds = array<i64: 1>, scalar_prefetch = 0 : i64, scratch_operands = 0 : i64, tpu.core_type = #tpu.core_type<tc>, window_params = [{transform_indices = @transform_0, window_bounds = array<i64: 8, 2048>}, {transform_indices = @transform_1, window_bounds = array<i64: 8, 2048>}]} {
    %c0 = arith.constant 0 : index
    %c0_0 = arith.constant 0 : index
    %0 = vector.load %arg1[%c0, %c0_0] : memref<8x2048xf32, #tpu.memory_space<vmem>>, vector<8x2048xf32>
    %c0_1 = arith.constant 0 : index
    %c0_2 = arith.constant 0 : index
    %1 = vector.load %arg2[%c0_1, %c0_2] : memref<8x2048xf32, #tpu.memory_space<vmem>>, vector<8x2048xf32>
    tpu.vector_store %arg2[%c0_1, %c0_2], %0 {strides = array<i32>} : memref<8x2048xf32, #tpu.memory_space<vmem>>, vector<8x2048xf32>,
    return
  }
  func.func @transform_0(%arg0: i32) -> (i32, i32) {
    %c0_i32 = arith.constant 0 : i32
    %c0_i32_0 = arith.constant 0 : i32
    return %arg0, %c0_i32 : i32, i32
  }
  func.func @transform_1(%arg0: i32) -> (i32, i32) {
    %c0_i32 = arith.constant 0 : i32
    %c0_i32_0 = arith.constant 0 : i32
    return %arg0, %c0_i32 : i32, i32
  }
}

</mosaic_0001>

<llo_original>
// kernel: tpu_custom_call.1
$region0: #{tpu_custom_call.1}
  #allocation0 [shape = 'u32[]', space=smem, size = 0x4, offset = 0x4, fixed_abs, tag = 'smem constant byte address 0x4 - core index']
  #allocation1 [shape = 'u32[144,128]{1,0:T(1,128)}', space=vmem, size = 0x12000, scoped, tag = 'internal scratch']
  %s0 = inlined_call_operand.hbm [shape: f32[8,2048], index: 0, kind: input, shape index: {}]
  %s1 = inlined_call_operand.hbm [shape: f32[8,2048], index: 1, kind: output, shape index: {}]
  %s2 = sld [smem:[#allocation0]]
  $region18: #{tpu_custom_call.1} parent=0
    _
  %s4 = ssub.s32 1, %s2
  %s5 = scalar_select 0, %s4, %s2
  $region1: #{tpu_custom_call.1} parent=0
    #allocation2 [shape = 'u8[65536]{0}', space=vmem, size = 0x10000, scoped, tag = 'input window, operand 0, single buffered']
    #allocation3 [shape = 's32[1]{0}', space=sflag, size = 0x4, scoped, tag = 'scoped memory for tpu_custom_call.1']
    #allocation4 [shape = 's32[1]{0}', space=sflag, size = 0x4, scoped, tag = 'scoped memory for tpu_custom_call.1']
    #allocation5 [shape = 'u8[65536]{0}', space=vmem, size = 0x10000, scoped, tag = 'output window, operand 0, single buffered']
    %6 = vsyncpa [#allocation3], 0
    %7 = vsyncpa [#allocation4], 0
    // Predicated region
    $region2: #{tpu_custom_call.1} parent=1 // pred_check
      _
    $region3: #{tpu_custom_call.1} parent=1 // pred_check_branch
      %9 = sbr.rel (0) target = $region5
    $region4: #{tpu_custom_call.1} parent=1 // pred_region
      %s11 = ssub.s32 2048, 2048
      %12 = vsyncadd [#allocation3], %s11
      %s14 = sshll.u32 [#allocation2], 4
      %s15 = int_to_ptr.vmem [resolvable:$true] %s14
      %17 = dma.hbm_to_vmem [thread:$0]  %s0, 2048, %s15, [#allocation3]
    $region5: #{tpu_custom_call.1} parent=1 // pred_fallthru
      _
    // Predicated region
    $region6: #{tpu_custom_call.1} parent=1 // pred_check
      _
    $region7: #{tpu_custom_call.1} parent=1 // pred_check_branch
      %19 = sbr.rel (0) target = $region9
    $region8: #{tpu_custom_call.1} parent=1 // pred_region
      %20 = dma.done [#allocation3], 2048
    $region9: #{tpu_custom_call.1} parent=1 // pred_fallthru
      _
    %v21 = vld [vmem:[#allocation2] sm:$0xff]
    %v22 = vld [vmem:[#allocation2 + $0x8] sm:$0xff]
    %v23 = vld [vmem:[#allocation2 + $0x10] sm:$0xff]
    %v24 = vld [vmem:[#allocation2 + $0x18] sm:$0xff]
    %v25 = vld [vmem:[#allocation2 + $0x20] sm:$0xff]
    %v26 = vld [vmem:[#allocation2 + $0x28] sm:$0xff]
    %v27 = vld [vmem:[#allocation2 + $0x30] sm:$0xff]
    %v28 = vld [vmem:[#allocation2 + $0x38] sm:$0xff]
    %v29 = vld [vmem:[#allocation2 + $0x40] sm:$0xff]
    %v30 = vld [vmem:[#allocation2 + $0x48] sm:$0xff]
    %v31 = vld [vmem:[#allocation2 + $0x50] sm:$0xff]
    %v32 = vld [vmem:[#allocation2 + $0x58] sm:$0xff]
    %v33 = vld [vmem:[#allocation2 + $0x60] sm:$0xff]
    %v34 = vld [vmem:[#allocation2 + $0x68] sm:$0xff]
    %v35 = vld [vmem:[#allocation2 + $0x70] sm:$0xff]
    %v36 = vld [vmem:[#allocation2 + $0x78] sm:$0xff]
    %37 = vst [vmem:[#allocation5] sm:$0xff] %v21
    %38 = vst [vmem:[#allocation5 + $0x8] sm:$0xff] %v22
    %39 = vst [vmem:[#allocation5 + $0x10] sm:$0xff] %v23
    %40 = vst [vmem:[#allocation5 + $0x18] sm:$0xff] %v24
    %41 = vst [vmem:[#allocation5 + $0x20] sm:$0xff] %v25
    %42 = vst [vmem:[#allocation5 + $0x28] sm:$0xff] %v26
    %43 = vst [vmem:[#allocation5 + $0x30] sm:$0xff] %v27
    %44 = vst [vmem:[#allocation5 + $0x38] sm:$0xff] %v28
    %45 = vst [vmem:[#allocation5 + $0x40] sm:$0xff] %v29
    %46 = vst [vmem:[#allocation5 + $0x48] sm:$0xff] %v30
    %47 = vst [vmem:[#allocation5 + $0x50] sm:$0xff] %v31
    %48 = vst [vmem:[#allocation5 + $0x58] sm:$0xff] %v32
    %49 = vst [vmem:[#allocation5 + $0x60] sm:$0xff] %v33
    %50 = vst [vmem:[#allocation5 + $0x68] sm:$0xff] %v34
    %51 = vst [vmem:[#allocation5 + $0x70] sm:$0xff] %v35
    %52 = vst [vmem:[#allocation5 + $0x78] sm:$0xff] %v36
    // Predicated region
    $region10: #{tpu_custom_call.1} parent=1 // pred_check
      _
    $region11: #{tpu_custom_call.1} parent=1 // pred_check_branch
      %54 = sbr.rel (0) target = $region13
    $region12: #{tpu_custom_call.1} parent=1 // pred_region
      %s56 = ssub.s32 2048, 2048
      %57 = vsyncadd [#allocation4], %s56
      %s59 = sshll.u32 [#allocation5], 4
      %s60 = int_to_ptr.vmem [resolvable:$true] %s59
      %62 = dma.vmem_to_hbm [thread:$0]  %s60, 2048, %s1, [#allocation4]
    $region13: #{tpu_custom_call.1} parent=1 // pred_fallthru
      _
    // Predicated region
    $region14: #{tpu_custom_call.1} parent=1 // pred_check
      _
    $region15: #{tpu_custom_call.1} parent=1 // pred_check_branch
      %64 = sbr.rel (0) target = $region17
    $region16: #{tpu_custom_call.1} parent=1 // pred_region
      %65 = dma.done [#allocation4], 2048
    $region17: #{tpu_custom_call.1} parent=1 // pred_fallthru
      _
    %66 = vsyncpa [#allocation3], 1
    %67 = vsyncpa [#allocation4], 1

</llo_original>
